<compile_context>
chip_gen: v7x
topology: tpu7x:2x2x1
jax: 0.10.0
libtpu: 0.0.40
codegen_flags: <defaults>
</compile_context>

<pallas_src>
import functools
import math

import jax
import jax.numpy as jnp
from jax.experimental import pallas as pl
from jax.experimental.pallas import tpu as pltpu


def _st_embed_kernel(x_ref, w_ref, tail_ref, o_ref, *, d_in, use_fma):
    """x_ref: (Rt, d_in), w_ref: (d_in, total), tail_ref: (Rt, total), o_ref: (Rt, total)."""
    x = x_ref[...]
    w = w_ref[...]
    if use_fma:
        # Tiny K: unrolled VPU FMAs (an MXU matmul with K~3 wastes >97% of the array).
        acc = x[:, 0:1] * w[0:1, :]
        for k in range(1, d_in):
            acc = acc + x[:, k:k + 1] * w[k:k + 1, :]
    else:
        # Larger K: real matmul with a large M = rows_tile.
        acc = jnp.dot(x, w, preferred_element_type=jnp.float32)
    o_ref[...] = (acc + tail_ref[...]).astype(o_ref.dtype)


def _choose_batch_tile(B, L, target_rows):
    """Pick bt (batch elements per tile).

    Prefers the largest bt <= target_rows/L that divides B (no padding, no final
    slice copy) and keeps bt*L a multiple of 8 (dense sublanes, legal BlockSpec).
    """
    cap = max(1, min(B, max(1, target_rows // max(L, 1))))
    for bt in range(cap, 0, -1):
        if B % bt == 0 and (bt * L) % 8 == 0:
            return bt, False
    # No aligned divisor of B: a single whole-array tile is always a legal
    # BlockSpec (block dims == full dims); take it unless it is huge.
    if B * L <= 8 * target_rows:
        return B, False
    # Huge & awkward B: pad the batch to an aligned tile and slice afterwards.
    step = 8 // math.gcd(L, 8)
    bt = max(step, (cap // step) * step)
    return bt, True


def spatio_temporal_embedding(x, w_t, bias, node_emb, adaptive_emb, *, target_rows=2048):
    """Pallas forward matching SpatioTemporalEmbedding.forward.

    x            : (B, L, input_dim) float32
    w_t          : (input_dim, input_embedding_dim)   (PyTorch Linear weight transposed)
    bias         : (input_embedding_dim,)
    node_emb     : (1, spatial_embedding_dim) or None
    adaptive_emb : (in_steps, adaptive_embedding_dim) or None
    returns      : (B, L, total_embed_dim) float32
    """
    B, L, d_in = x.shape
    in_emb = w_t.shape[1]
    sp_emb = 0 if node_emb is None else node_emb.shape[1]
    adp_emb = 0 if adaptive_emb is None else adaptive_emb.shape[1]
    if adaptive_emb is not None:
        assert L == adaptive_emb.shape[0], (
            f"Input seq_len {L} != initialized in_steps {adaptive_emb.shape[0]}")
    total = in_emb + sp_emb + adp_emb

    # ---- One-time wrapper-side prep: fold bias/node/adaptive into one additive
    # (L, total) tail; zero-pad W into the tail columns (removes in-kernel concat). ----
    w_pad = jnp.pad(w_t.astype(jnp.float32), ((0, 0), (0, total - in_emb)))
    pieces = [jnp.broadcast_to(bias.astype(jnp.float32)[None, :], (L, in_emb))]
    if sp_emb > 0:
        pieces.append(jnp.broadcast_to(node_emb.astype(jnp.float32), (L, sp_emb)))
    if adp_emb > 0:
        pieces.append(adaptive_emb.astype(jnp.float32))
    tail = jnp.concatenate(pieces, axis=-1) if len(pieces) > 1 else pieces[0]

    # ---- Row tiling: flatten (B, L) -> rows; tile over batch groups. ----
    bt, need_pad = _choose_batch_tile(B, L, target_rows)
    if need_pad:
        grid_b = pl.cdiv(B, bt)
        b_pad = grid_b * bt
        x_in = jnp.pad(x, ((0, b_pad - B), (0, 0), (0, 0)))
    else:
        b_pad = B
        grid_b = B // bt
        x_in = x
    rows_t = bt * L

    x2 = x_in.reshape(b_pad * L, d_in)        # free: row-major contiguous
    tail_tile = jnp.tile(tail, (bt, 1))       # (rows_t, total), resident across the grid

    # Explicit VMEM budget (physical, lane-padded) with headroom; well under all chips.
    lane_pad = lambda c: ((c + 127) // 128) * 128
    io_tiles = rows_t * (lane_pad(d_in) + lane_pad(total)) * 4     # x + out tile
    resident = (rows_t + 8) * lane_pad(total) * 4                  # tail_tile + w_pad
    vmem_limit = int(min(64 * 2**20,
                         max(16 * 2**20, 2 * io_tiles + 2 * resident + 2**20)))

    kernel = functools.partial(_st_embed_kernel, d_in=d_in, use_fma=(d_in <= 8))

    out = pl.pallas_call(
        kernel,
        out_shape=jax.ShapeDtypeStruct((b_pad * L, total), jnp.float32),
        grid_spec=pltpu.PrefetchScalarGridSpec(
            num_scalar_prefetch=0,
            grid=(grid_b,),
            in_specs=[
                pl.BlockSpec((rows_t, d_in), lambda r: (r, 0)),
                pl.BlockSpec((d_in, total), lambda r: (0, 0)),    # resident (const index)
                pl.BlockSpec((rows_t, total), lambda r: (0, 0)),  # resident (const index)
            ],
            out_specs=pl.BlockSpec((rows_t, total), lambda r: (r, 0)),
        ),
        compiler_params=pltpu.CompilerParams(
            dimension_semantics=("parallel",),
            vmem_limit_bytes=vmem_limit),
    )(x2, w_pad, tail_tile)

    out = out.reshape(b_pad, L, total)
    return out if b_pad == B else out[:B]


def _xavier_uniform(key, shape):
    fan_out, fan_in = shape  # PyTorch 2-D convention
    bound = (6.0 / (fan_in + fan_out)) ** 0.5
    return jax.random.uniform(key, shape, jnp.float32, -bound, bound)


def _reference(x, w_t, bias, node_emb, adaptive_emb):
    B, L, _ = x.shape
    feats = [jnp.einsum("bld,de->ble", x, w_t) + bias]
    if node_emb is not None:
        feats.append(jnp.broadcast_to(node_emb[None], (B, L, node_emb.shape[1])))
    if adaptive_emb is not None:
        feats.append(jnp.broadcast_to(adaptive_emb[None], (B, L, adaptive_emb.shape[1])))
    return jnp.concatenate(feats, axis=-1)


if __name__ == "__main__":
    # Small config exercising all three feature branches.
    in_steps = 8
    input_dim = 3            # raw input_dim=1 plus tod/dow channels
    input_embedding_dim = 24
    spatial_embedding_dim = 8
    adaptive_embedding_dim = 32
    batch = 2

    key = jax.random.PRNGKey(0)
    k_x, k_w, k_b, k_node, k_adp = jax.random.split(key, 5)

    # nn.Linear(input_dim, input_embedding_dim): PyTorch weight is (out, in); pass it transposed.
    w = jax.random.uniform(k_w, (input_embedding_dim, input_dim), jnp.float32,
                           -(1.0 / input_dim) ** 0.5, (1.0 / input_dim) ** 0.5)
    b = jax.random.uniform(k_b, (input_embedding_dim,), jnp.float32,
                           -(1.0 / input_dim) ** 0.5, (1.0 / input_dim) ** 0.5)
    node_emb = _xavier_uniform(k_node, (1, spatial_embedding_dim))
    adaptive_emb = _xavier_uniform(k_adp, (in_steps, adaptive_embedding_dim))

    x = jax.random.normal(k_x, (batch, in_steps, input_dim), jnp.float32)
    w_t = w.T  # (input_dim, input_embedding_dim)

    out = spatio_temporal_embedding(x, w_t, b, node_emb, adaptive_emb)
    out = jax.block_until_ready(out)

    ref = _reference(x, w_t, b, node_emb, adaptive_emb)
    assert out.shape == (batch, in_steps,
                         input_embedding_dim + spatial_embedding_dim + adaptive_embedding_dim)
    assert jnp.allclose(out, ref, atol=1e-5, rtol=1e-5)

    print("KERNEL_OK")
</pallas_src>

<mosaic_0001>
module attributes {stable_mosaic.version = 11 : i64} {
  func.func @_st_embed_kernel(%arg0: i32, %arg1: memref<16x3xf32, #tpu.memory_space<vmem>>, %arg2: memref<3x64xf32, #tpu.memory_space<vmem>>, %arg3: memref<16x64xf32, #tpu.memory_space<vmem>>, %arg4: memref<16x64xf32, #tpu.memory_space<vmem>>) attributes {dimension_semantics = [#tpu.dimension_semantics<parallel>], iteration_bounds = array<i64: 1>, scalar_prefetch = 0 : i64, scratch_operands = 0 : i64, tpu.core_type = #tpu.core_type<tc>, window_params = [{transform_indices = @transform_0, window_bounds = array<i64: 16, 3>}, {pipeline_mode = #tpu.pipeline_mode<synchronous>, transform_indices = @transform_1, window_bounds = array<i64: 3, 64>}, {pipeline_mode = #tpu.pipeline_mode<synchronous>, transform_indices = @transform_2, window_bounds = array<i64: 16, 64>}, {transform_indices = @transform_3, window_bounds = array<i64: 16, 64>}]} {
    %c0 = arith.constant 0 : index
    %c0_0 = arith.constant 0 : index
    %0 = vector.load %arg1[%c0, %c0_0] : memref<16x3xf32, #tpu.memory_space<vmem>>, vector<16x3xf32>
    %c0_1 = arith.constant 0 : index
    %c0_2 = arith.constant 0 : index
    %1 = vector.load %arg2[%c0_1, %c0_2] : memref<3x64xf32, #tpu.memory_space<vmem>>, vector<3x64xf32>
    %2 = vector.extract_strided_slice %0 {offsets = [0, 0], sizes = [16, 1], strides = [1, 1]} : vector<16x3xf32> to vector<16x1xf32>
    %3 = vector.extract_strided_slice %1 {offsets = [0, 0], sizes = [1, 64], strides = [1, 1]} : vector<3x64xf32> to vector<1x64xf32>
    %4 = vector.broadcast %2 : vector<16x1xf32> to vector<16x64xf32>
    %5 = vector.broadcast %3 : vector<1x64xf32> to vector<16x64xf32>
    %6 = arith.mulf %4, %5 : vector<16x64xf32>
    %7 = vector.extract_strided_slice %0 {offsets = [0, 1], sizes = [16, 1], strides = [1, 1]} : vector<16x3xf32> to vector<16x1xf32>
    %8 = vector.extract_strided_slice %1 {offsets = [1, 0], sizes = [1, 64], strides = [1, 1]} : vector<3x64xf32> to vector<1x64xf32>
    %9 = vector.broadcast %7 : vector<16x1xf32> to vector<16x64xf32>
    %10 = vector.broadcast %8 : vector<1x64xf32> to vector<16x64xf32>
    %11 = arith.mulf %9, %10 : vector<16x64xf32>
    %12 = arith.addf %6, %11 : vector<16x64xf32>
    %13 = vector.extract_strided_slice %0 {offsets = [0, 2], sizes = [16, 1], strides = [1, 1]} : vector<16x3xf32> to vector<16x1xf32>
    %14 = vector.extract_strided_slice %1 {offsets = [2, 0], sizes = [1, 64], strides = [1, 1]} : vector<3x64xf32> to vector<1x64xf32>
    %15 = vector.broadcast %13 : vector<16x1xf32> to vector<16x64xf32>
    %16 = vector.broadcast %14 : vector<1x64xf32> to vector<16x64xf32>
    %17 = arith.mulf %15, %16 : vector<16x64xf32>
    %18 = arith.addf %12, %17 : vector<16x64xf32>
    %c0_3 = arith.constant 0 : index
    %c0_4 = arith.constant 0 : index
    %19 = vector.load %arg3[%c0_3, %c0_4] : memref<16x64xf32, #tpu.memory_space<vmem>>, vector<16x64xf32>
    %20 = arith.addf %18, %19 : vector<16x64xf32>
    %c0_5 = arith.constant 0 : index
    %c0_6 = arith.constant 0 : index
    %21 = vector.load %arg4[%c0_5, %c0_6] : memref<16x64xf32, #tpu.memory_space<vmem>>, vector<16x64xf32>
    tpu.vector_store %arg4[%c0_5, %c0_6], %20 {strides = array<i32>} : memref<16x64xf32, #tpu.memory_space<vmem>>, vector<16x64xf32>,
    return
  }
  func.func @transform_0(%arg0: i32) -> (i32, i32) {
    %c0_i32 = arith.constant 0 : i32
    %c0_i32_0 = arith.constant 0 : i32
    return %arg0, %c0_i32 : i32, i32
  }
  func.func @transform_1(%arg0: i32) -> (i32, i32) {
    %c0_i32 = arith.constant 0 : i32
    %c0_i32_0 = arith.constant 0 : i32
    %c0_i32_1 = arith.constant 0 : i32
    return %c0_i32, %c0_i32_0 : i32, i32
  }
  func.func @transform_2(%arg0: i32) -> (i32, i32) {
    %c0_i32 = arith.constant 0 : i32
    %c0_i32_0 = arith.constant 0 : i32
    %c0_i32_1 = arith.constant 0 : i32
    return %c0_i32, %c0_i32_0 : i32, i32
  }
  func.func @transform_3(%arg0: i32) -> (i32, i32) {
    %c0_i32 = arith.constant 0 : i32
    %c0_i32_0 = arith.constant 0 : i32
    return %arg0, %c0_i32 : i32, i32
  }
}

</mosaic_0001>

<llo_original>
// kernel: tpu_custom_call.1
$region0: #{tpu_custom_call.1}
  #allocation0 [shape = 'u32[]', space=smem, size = 0x4, offset = 0x4, fixed_abs, tag = 'smem constant byte address 0x4 - core index']
  #allocation1 [shape = 'u32[144,128]{1,0:T(1,128)}', space=vmem, size = 0x12000, scoped, tag = 'internal scratch']
  %s0 = inlined_call_operand.vmem [shape: f32[16,3], index: 0, kind: input, shape index: {}]
  %s1 = inlined_call_operand.vmem [shape: f32[3,64], index: 1, kind: input, shape index: {}]
  %s2 = inlined_call_operand.vmem [shape: f32[16,64], index: 2, kind: input, shape index: {}]
  %s3 = inlined_call_operand.hbm [shape: f32[16,64], index: 3, kind: output, shape index: {}]
  %s4 = sld [smem:[#allocation0]]
  $region22: #{tpu_custom_call.1} parent=0
    _
  %s6 = ssub.s32 1, %s4
  %s7 = scalar_select 0, %s6, %s4
  $region1: #{tpu_custom_call.1} parent=0
    #allocation2 [shape = 'u8[8192]{0}', space=vmem, size = 0x2000, scoped, tag = 'output window, operand 0, single buffered']
    #allocation3 [shape = 's32[1]{0}', space=sflag, size = 0x4, scoped, tag = 'scoped memory for tpu_custom_call.1']
    %8 = vsyncpa [#allocation3], 0
    // Predicated region
    $region2: #{tpu_custom_call.1} parent=1 // pred_check
      _
    $region3: #{tpu_custom_call.1} parent=1 // pred_check_branch
      %10 = sbr.rel (0) target = $region5
    $region4: #{tpu_custom_call.1} parent=1 // pred_region
      _
    $region5: #{tpu_custom_call.1} parent=1 // pred_fallthru
      _
    // Predicated region
    $region6: #{tpu_custom_call.1} parent=1 // pred_check
      _
    $region7: #{tpu_custom_call.1} parent=1 // pred_check_branch
      %12 = sbr.rel (0) target = $region9
    $region8: #{tpu_custom_call.1} parent=1 // pred_region
      _
    $region9: #{tpu_custom_call.1} parent=1 // pred_fallthru
      _
    // Predicated region
    $region10: #{tpu_custom_call.1} parent=1 // pred_check
      _
    $region11: #{tpu_custom_call.1} parent=1 // pred_check_branch
      %14 = sbr.rel (0) target = $region13
    $region12: #{tpu_custom_call.1} parent=1 // pred_region
      _
    $region13: #{tpu_custom_call.1} parent=1 // pred_fallthru
      _
    %v15 = vld [vmem:[%s0] sm:$0xff]
    %v16 = vld [vmem:[%s0 + $0x8] sm:$0xff]
    %v17 = vld [vmem:[%s1] sm:$0x7]
    %19 = vset.pattern.permute.xlu0 0
    %20 = vperm.xlu0 %19, %v15
    %v21 = vpop.permute.xlu0 %20
    %24 = vset.pattern.permute.xlu0 0
    %25 = vperm.xlu0 %24, %v16
    %v26 = vpop.permute.xlu0 %25
    %v28 = vlaneseq
    %v29 = vshrl.u32 %v28, 7
    %v30 = vsub.s32 0, %v29
    %v31 = vrot.slane %v17, %v30
    %v32 = vmul.f32 %v21, %v31
    %v33 = vmul.f32 %v26, %v31
    %34 = vset.pattern.permute.xlu0 1
    %35 = vperm.xlu0 %34, %v15
    %v36 = vpop.permute.xlu0 %35
    %38 = vset.pattern.permute.xlu0 1
    %39 = vperm.xlu0 %38, %v16
    %v40 = vpop.permute.xlu0 %39
    %v42 = vlaneseq
    %v43 = vshrl.u32 %v42, 7
    %v44 = vsub.s32 1, %v43
    %v45 = vrot.slane %v17, %v44
    %v46 = vmul.f32 %v36, %v45
    %v47 = vmul.f32 %v40, %v45
    %v48 = vadd.f32 %v32, %v46
    %v49 = vadd.f32 %v33, %v47
    %50 = vset.pattern.permute.xlu0 2
    %51 = vperm.xlu0 %50, %v15
    %v52 = vpop.permute.xlu0 %51
    %54 = vset.pattern.permute.xlu0 2
    %55 = vperm.xlu0 %54, %v16
    %v56 = vpop.permute.xlu0 %55
    %v58 = vlaneseq
    %v59 = vshrl.u32 %v58, 7
    %v60 = vsub.s32 2, %v59
    %v61 = vrot.slane %v17, %v60
    %v62 = vmul.f32 %v52, %v61
    %v63 = vmul.f32 %v56, %v61
    %v64 = vadd.f32 %v48, %v62
    %v65 = vadd.f32 %v49, %v63
    %v66 = vld [vmem:[%s2] sm:$0xff]
    %v67 = vld [vmem:[%s2 + $0x8] sm:$0xff]
    %v68 = vadd.f32 %v64, %v66
    %v69 = vadd.f32 %v65, %v67
    %vm70 = vcmask 523264
    %71 = vst.msk [vmem:[#allocation2] sm:$0xff] %vm70, %v68
    %72 = vst.msk [vmem:[#allocation2 + $0x8] sm:$0xff] %vm70, %v69
    // Predicated region
    $region14: #{tpu_custom_call.1} parent=1 // pred_check
      _
    $region15: #{tpu_custom_call.1} parent=1 // pred_check_branch
      %74 = sbr.rel (0) target = $region17
    $region16: #{tpu_custom_call.1} parent=1 // pred_region
      %s76 = ssub.s32 256, 256
      %77 = vsyncadd [#allocation3], %s76
      %s78 = sshll.u32 [#allocation2], 4
      %s79 = int_to_ptr.vmem [resolvable:$true] %s78
      %84 = dma.vmem_to_hbm [thread:$0]  %s79, 256, %s3, [#allocation3], 128, 128, 8
    $region17: #{tpu_custom_call.1} parent=1 // pred_fallthru
      _
    // Predicated region
    $region18: #{tpu_custom_call.1} parent=1 // pred_check
      _
    $region19: #{tpu_custom_call.1} parent=1 // pred_check_branch
      %86 = sbr.rel (0) target = $region21
    $region20: #{tpu_custom_call.1} parent=1 // pred_region
      %87 = dma.done [#allocation3], 256
    $region21: #{tpu_custom_call.1} parent=1 // pred_fallthru
      _
    %88 = vsyncpa [#allocation3], 1

</llo_original>
